<compile_context>
chip_gen: v6e
topology: v6e:2x2x1
jax: 0.10.0
libtpu: 0.0.40
codegen_flags: <defaults>
</compile_context>

<pallas_src>
import functools

import jax
import jax.numpy as jnp
from jax.experimental import pallas as pl
from jax.experimental.pallas import tpu as pltpu


def _pick_feature_chunk(f_pad):
    # Largest lane-aligned chunk <= 1024 that divides f_pad (f_pad % 128 == 0).
    if f_pad <= 1024:
        return f_pad
    for c in (1024, 512, 256, 128):
        if f_pad % c == 0:
            return c
    return 128


def _tuple_loss_kernel(x_ref, lab_ref, out_ref, *, batch_size, tuple_size, f_pad, f_chunk):
    # x_ref:  (bt, T*f_pad) input tile, native dtype, utterance t at lanes [t*f_pad, (t+1)*f_pad)
    # lab_ref:(bt, 1) f32 labels tile
    # out_ref:(1, 1) f32 per-tile partial sum (leading grid dim squeezed)
    pid = pl.program_id(0)
    bt = x_ref.shape[0]
    T = tuple_size
    inv_enroll = jnp.float32(1.0 / (T - 1))

    dot = jnp.zeros((bt, 1), jnp.float32)
    n1sq = jnp.zeros((bt, 1), jnp.float32)
    n2sq = jnp.zeros((bt, 1), jnp.float32)

    # Static, unrolled chunking of the feature axis: bounds the f32 working set
    # to O(bt * f_chunk) regardless of F, keeps lane-dense aligned loads.
    for base in range(0, f_pad, f_chunk):
        wi_eval = x_ref[:, base:base + f_chunk].astype(jnp.float32)          # eval utterance chunk
        enroll = x_ref[:, f_pad + base:f_pad + base + f_chunk].astype(jnp.float32)
        for t in range(2, T):                                                 # stream tuple-axis sum
            off = t * f_pad + base
            enroll = enroll + x_ref[:, off:off + f_chunk].astype(jnp.float32)
        c_k = enroll * inv_enroll                                             # centroid of w[b, 1:]
        dot = dot + jnp.sum(c_k * wi_eval, axis=-1, keepdims=True)
        n1sq = n1sq + jnp.sum(c_k * c_k, axis=-1, keepdims=True)
        n2sq = n2sq + jnp.sum(wi_eval * wi_eval, axis=-1, keepdims=True)

    # cos = dot / max(||c_k|| * ||w_eval||, 1e-6)
    #     = dot * rsqrt(max(||c_k||^2 * ||w_eval||^2, 1e-12))   (rsqrt on the EUP)
    inv_denom = jax.lax.rsqrt(jnp.maximum(n1sq * n2sq, jnp.float32(1e-12)))
    cos = dot * inv_denom

    sig = 1.0 / (1.0 + jnp.exp(-cos))                                         # sigmoid; exp -> EUP

    lab = lab_ref[...].astype(jnp.float32)                                    # (bt, 1)
    # Exact parenthesization of the reference: sig*l + (1 - sig*(1 - l)).
    terms = sig * lab + (1.0 - sig * (1.0 - lab))

    # Mask batch-padding rows (batch padded up to a multiple of the tile).
    row = pid * bt + jax.lax.broadcasted_iota(jnp.int32, (bt, 1), 0)
    valid = (row < batch_size).astype(jnp.float32)
    out_ref[...] = jnp.sum(terms * valid, keepdims=True)                      # (1, 1) partial


def tuple_loss(spk_representation, labels, batch_size, tuple_size, *, batch_tile=None):
    """spk_representation: (batch_size*tuple_size, feature), labels: (batch_size,)."""
    assert tuple_size >= 2, "tuple_size must be >= 2 (enroll set would be empty / divide by zero)"
    feature_size = spk_representation.shape[1]
    # Keep the input in its native dtype (bf16 stays bf16 for the DMA; cast happens in-kernel).
    x = spk_representation.reshape(batch_size, tuple_size, feature_size)

    # Lane-dense feature axis: zero-pad F up to a multiple of 128 (exact for dot / norms),
    # then flatten the tuple axis into lanes -> every utterance starts at a 128-aligned lane.
    f_pad = ((feature_size + 127) // 128) * 128
    if f_pad != feature_size:
        x = jnp.pad(x, ((0, 0), (0, 0), (0, f_pad - feature_size)))
    x = x.reshape(batch_size, tuple_size * f_pad)

    f_chunk = _pick_feature_chunk(f_pad)

    itemsize = jnp.dtype(x.dtype).itemsize
    sublane_mult = max(8, 32 // itemsize)            # 8 for f32, 16 for bf16, 32 for int8
    row_in_bytes = tuple_size * f_pad * itemsize     # one tuple row in its native dtype
    row_work_bytes = 4 * f_chunk * 4                 # live f32 temporaries per row per chunk

    # Generation-aware sizing: v7x has 64 MiB VMEM per TC, v5e/v6e have 128 MiB.
    try:
        vmem_cap = int(pltpu.get_tpu_info().vmem_capacity_bytes)
    except Exception:
        vmem_cap = 64 << 20                          # conservative fallback (v7x per-core)

    if batch_tile is None:
        budget = min(int(vmem_cap * 0.6), 80 << 20)  # 2 x-buffers + f32 working set
        bt = budget // (2 * row_in_bytes + row_work_bytes)
        b_cap = ((batch_size + sublane_mult - 1) // sublane_mult) * sublane_mult
        bt = int(max(sublane_mult, min((bt // sublane_mult) * sublane_mult, 4096, b_cap)))
    else:
        bt = ((int(batch_tile) + sublane_mult - 1) // sublane_mult) * sublane_mult

    # Pad batch to a multiple of the tile; padded rows are masked inside the kernel.
    b_pad = ((batch_size + bt - 1) // bt) * bt
    if b_pad != batch_size:
        x = jnp.pad(x, ((0, b_pad - batch_size), (0, 0)))
    lab = labels.reshape(batch_size, 1).astype(jnp.float32)
    if b_pad != batch_size:
        lab = jnp.pad(lab, ((0, b_pad - batch_size), (0, 0)))

    n_tiles = b_pad // bt

    # vmem_limit accounts for double-buffered input AND the f32 upcast working set.
    needed = bt * (2 * row_in_bytes + row_work_bytes) + (1 << 20)
    vmem_limit = int(min(max(needed + (8 << 20), 32 << 20), vmem_cap))

    kernel = functools.partial(
        _tuple_loss_kernel,
        batch_size=batch_size, tuple_size=tuple_size, f_pad=f_pad, f_chunk=f_chunk,
    )
    partials = pl.pallas_call(
        kernel,
        out_shape=jax.ShapeDtypeStruct((n_tiles, 1, 1), jnp.float32),
        grid_spec=pltpu.PrefetchScalarGridSpec(
            num_scalar_prefetch=0,
            grid=(n_tiles,),
            in_specs=[
                pl.BlockSpec((bt, tuple_size * f_pad), lambda i: (i, 0)),
                pl.BlockSpec((bt, 1), lambda i: (i, 0)),
            ],
            # Per-tile partial sums: no cross-iteration carry -> axis can shard
            # across TensorCores on v7x; harmless on single-TC v5e/v6e.
            out_specs=pl.BlockSpec((None, 1, 1), lambda i: (i, 0, 0)),
        ),
        compiler_params=pltpu.CompilerParams(
            dimension_semantics=("parallel",),
            vmem_limit_bytes=vmem_limit,
        ),
    )(x, lab)

    total = jnp.sum(partials)
    return -jnp.log(total / jnp.float32(batch_size))


def tuple_loss_reference(spk_representation, labels, batch_size, tuple_size):
    # Pure-JAX reference mirroring the PyTorch forward loop.
    feature_size = spk_representation.shape[1]
    w = spk_representation.reshape(batch_size, tuple_size, feature_size).astype(jnp.float32)
    loss = jnp.float32(0.0)
    for b in range(batch_size):
        wi_enroll = w[b, 1:]
        wi_eval = w[b, 0]
        c_k = jnp.mean(wi_enroll, axis=0)
        denom = jnp.maximum(jnp.linalg.norm(c_k) * jnp.linalg.norm(wi_eval), 1e-6)
        cos = jnp.dot(c_k, wi_eval) / denom
        sig = jax.nn.sigmoid(cos)
        loss = loss + sig * labels[b] + (1.0 - sig * (1.0 - labels[b]))
    return -jnp.log(loss / batch_size)


if __name__ == "__main__":
    batch_size = 4
    tuple_size = 8
    feature_size = 32

    key = jax.random.PRNGKey(0)
    k1, k2 = jax.random.split(key)
    spk_representation = jax.random.normal(
        k1, (batch_size * tuple_size, feature_size), dtype=jnp.float32
    )
    labels = jax.random.bernoulli(k2, 0.5, (batch_size,)).astype(jnp.float32)

    out = tuple_loss(spk_representation, labels, batch_size, tuple_size)
    out = jax.block_until_ready(out)

    ref = tuple_loss_reference(spk_representation, labels, batch_size, tuple_size)
    assert jnp.allclose(out, ref, rtol=1e-4, atol=1e-5), (out, ref)

    print("KERNEL_OK")
</pallas_src>

<mosaic_0001>
module attributes {stable_mosaic.version = 11 : i64} {
  func.func @_tuple_loss_kernel(%arg0: i32, %arg1: memref<8x1024xf32, #tpu.memory_space<vmem>>, %arg2: memref<8x1xf32, #tpu.memory_space<vmem>>, %arg3: memref<1x1x1xf32, #tpu.memory_space<vmem>>) attributes {dimension_semantics = [#tpu.dimension_semantics<parallel>], iteration_bounds = array<i64: 1>, scalar_prefetch = 0 : i64, scratch_operands = 0 : i64, tpu.core_type = #tpu.core_type<tc>, window_params = [{transform_indices = @transform_0, window_bounds = array<i64: 8, 1024>}, {transform_indices = @transform_1, window_bounds = array<i64: 8, 1>}, {transform_indices = @transform_2, window_bounds = array<i64: 1, 1, 1>}]} {
    %cst = arith.constant 0.000000e+00 : f32
    %0 = vector.broadcast %cst : f32 to vector<8x1xf32>
    %cst_0 = arith.constant 0.000000e+00 : f32
    %1 = vector.broadcast %cst_0 : f32 to vector<8x1xf32>
    %cst_1 = arith.constant 0.000000e+00 : f32
    %2 = vector.broadcast %cst_1 : f32 to vector<8x1xf32>
    %c0 = arith.constant 0 : index
    %c0_2 = arith.constant 0 : index
    %3 = vector.load %arg1[%c0, %c0_2] : memref<8x1024xf32, #tpu.memory_space<vmem>>, vector<8x128xf32>
    %c0_3 = arith.constant 0 : index
    %c128 = arith.constant 128 : index
    %4 = vector.load %arg1[%c0_3, %c128] : memref<8x1024xf32, #tpu.memory_space<vmem>>, vector<8x128xf32>
    %c0_4 = arith.constant 0 : index
    %c256 = arith.constant 256 : index
    %5 = vector.load %arg1[%c0_4, %c256] : memref<8x1024xf32, #tpu.memory_space<vmem>>, vector<8x128xf32>
    %6 = arith.addf %4, %5 : vector<8x128xf32>
    %c0_5 = arith.constant 0 : index
    %c384 = arith.constant 384 : index
    %7 = vector.load %arg1[%c0_5, %c384] : memref<8x1024xf32, #tpu.memory_space<vmem>>, vector<8x128xf32>
    %8 = arith.addf %6, %7 : vector<8x128xf32>
    %c0_6 = arith.constant 0 : index
    %c512 = arith.constant 512 : index
    %9 = vector.load %arg1[%c0_6, %c512] : memref<8x1024xf32, #tpu.memory_space<vmem>>, vector<8x128xf32>
    %10 = arith.addf %8, %9 : vector<8x128xf32>
    %c0_7 = arith.constant 0 : index
    %c640 = arith.constant 640 : index
    %11 = vector.load %arg1[%c0_7, %c640] : memref<8x1024xf32, #tpu.memory_space<vmem>>, vector<8x128xf32>
    %12 = arith.addf %10, %11 : vector<8x128xf32>
    %c0_8 = arith.constant 0 : index
    %c768 = arith.constant 768 : index
    %13 = vector.load %arg1[%c0_8, %c768] : memref<8x1024xf32, #tpu.memory_space<vmem>>, vector<8x128xf32>
    %14 = arith.addf %12, %13 : vector<8x128xf32>
    %c0_9 = arith.constant 0 : index
    %c896 = arith.constant 896 : index
    %15 = vector.load %arg1[%c0_9, %c896] : memref<8x1024xf32, #tpu.memory_space<vmem>>, vector<8x128xf32>
    %16 = arith.addf %14, %15 : vector<8x128xf32>
    %cst_10 = arith.constant 0.142857149 : f32
    %17 = vector.broadcast %cst_10 : f32 to vector<8x128xf32>
    %18 = arith.mulf %16, %17 : vector<8x128xf32>
    %19 = arith.mulf %18, %3 : vector<8x128xf32>
    %cst_11 = arith.constant dense<0.000000e+00> : vector<8xf32>
    %20 = vector.multi_reduction <add>, %19, %cst_11 [1] : vector<8x128xf32> to vector<8xf32>
    %21 = vector.shape_cast %20 : vector<8xf32> to vector<8x1xf32>
    %22 = arith.addf %0, %21 : vector<8x1xf32>
    %23 = arith.mulf %18, %18 : vector<8x128xf32>
    %cst_12 = arith.constant dense<0.000000e+00> : vector<8xf32>
    %24 = vector.multi_reduction <add>, %23, %cst_12 [1] : vector<8x128xf32> to vector<8xf32>
    %25 = vector.shape_cast %24 : vector<8xf32> to vector<8x1xf32>
    %26 = arith.addf %1, %25 : vector<8x1xf32>
    %27 = arith.mulf %3, %3 : vector<8x128xf32>
    %cst_13 = arith.constant dense<0.000000e+00> : vector<8xf32>
    %28 = vector.multi_reduction <add>, %27, %cst_13 [1] : vector<8x128xf32> to vector<8xf32>
    %29 = vector.shape_cast %28 : vector<8xf32> to vector<8x1xf32>
    %30 = arith.addf %2, %29 : vector<8x1xf32>
    %31 = arith.mulf %26, %30 : vector<8x1xf32>
    %cst_14 = arith.constant 9.99999996E-13 : f32
    %32 = vector.broadcast %cst_14 : f32 to vector<8x1xf32>
    %33 = arith.maximumf %31, %32 : vector<8x1xf32>
    %34 = math.rsqrt %33 : vector<8x1xf32>
    %35 = arith.mulf %22, %34 : vector<8x1xf32>
    %cst_15 = arith.constant 0.000000e+00 : f32
    %36 = vector.broadcast %cst_15 : f32 to vector<8x1xf32>
    %37 = arith.subf %36, %35 : vector<8x1xf32>
    %38 = math.exp %37 : vector<8x1xf32>
    %cst_16 = arith.constant 1.000000e+00 : f32
    %39 = vector.broadcast %cst_16 : f32 to vector<8x1xf32>
    %40 = arith.addf %39, %38 : vector<8x1xf32>
    %cst_17 = arith.constant 1.000000e+00 : f32
    %41 = vector.broadcast %cst_17 : f32 to vector<8x1xf32>
    %42 = arith.divf %41, %40 : vector<8x1xf32>
    %c0_18 = arith.constant 0 : index
    %c0_19 = arith.constant 0 : index
    %43 = vector.load %arg2[%c0_18, %c0_19] : memref<8x1xf32, #tpu.memory_space<vmem>>, vector<8x1xf32>
    %44 = arith.mulf %42, %43 : vector<8x1xf32>
    %cst_20 = arith.constant 1.000000e+00 : f32
    %45 = vector.broadcast %cst_20 : f32 to vector<8x1xf32>
    %46 = arith.subf %45, %43 : vector<8x1xf32>
    %47 = arith.mulf %42, %46 : vector<8x1xf32>
    %cst_21 = arith.constant 1.000000e+00 : f32
    %48 = vector.broadcast %cst_21 : f32 to vector<8x1xf32>
    %49 = arith.subf %48, %47 : vector<8x1xf32>
    %50 = arith.addf %44, %49 : vector<8x1xf32>
    %c8_i32 = arith.constant 8 : i32
    %51 = arith.muli %arg0, %c8_i32 : i32
    %52 = tpu.iota {dimensions = array<i32: 0>} : vector<8x1xi32>
    %53 = vector.broadcast %51 : i32 to vector<8x1xi32>
    %54 = arith.addi %53, %52 : vector<8x1xi32>
    %c4_i32 = arith.constant 4 : i32
    %55 = vector.broadcast %c4_i32 : i32 to vector<8x1xi32>
    %56 = arith.cmpi slt, %54, %55 : vector<8x1xi32>
    %57 = arith.extui %56 : vector<8x1xi1> to vector<8x1xi32>
    %58 = arith.sitofp %57 : vector<8x1xi32> to vector<8x1xf32>
    %59 = arith.mulf %50, %58 : vector<8x1xf32>
    %60 = vector.shape_cast %59 : vector<8x1xf32> to vector<1x8x1xf32>
    %cst_22 = arith.constant dense<0.000000e+00> : vector<1xf32>
    %61 = vector.multi_reduction <add>, %60, %cst_22 [1, 2] : vector<1x8x1xf32> to vector<1xf32>
    %62 = vector.shape_cast %61 : vector<1xf32> to vector<1x1x1xf32>
    %63 = vector.extract %62[0, 0, 0] : f32 from vector<1x1x1xf32>
    %64 = vector.broadcast %63 : f32 to vector<1x1xf32>
    %c0_23 = arith.constant 0 : index
    %c0_24 = arith.constant 0 : index
    %c0_25 = arith.constant 0 : index
    %65 = vector.load %arg3[%c0_23, %c0_24, %c0_25] : memref<1x1x1xf32, #tpu.memory_space<vmem>>, vector<1x1x1xf32>
    %66 = vector.shape_cast %65 : vector<1x1x1xf32> to vector<1x1xf32>
    %67 = vector.shape_cast %64 : vector<1x1xf32> to vector<1x1x1xf32>
    tpu.vector_store %arg3[%c0_23, %c0_24, %c0_25], %67 {strides = array<i32>} : memref<1x1x1xf32, #tpu.memory_space<vmem>>, vector<1x1x1xf32>,
    return
  }
  func.func @transform_0(%arg0: i32) -> (i32, i32) {
    %c0_i32 = arith.constant 0 : i32
    %c0_i32_0 = arith.constant 0 : i32
    return %arg0, %c0_i32 : i32, i32
  }
  func.func @transform_1(%arg0: i32) -> (i32, i32) {
    %c0_i32 = arith.constant 0 : i32
    %c0_i32_0 = arith.constant 0 : i32
    return %arg0, %c0_i32 : i32, i32
  }
  func.func @transform_2(%arg0: i32) -> (i32, i32, i32) {
    %c0_i32 = arith.constant 0 : i32
    %c0_i32_0 = arith.constant 0 : i32
    %c0_i32_1 = arith.constant 0 : i32
    return %arg0, %c0_i32, %c0_i32_0 : i32, i32, i32
  }
}

</mosaic_0001>

<llo_original>
// kernel: tpu_custom_call.1
$region0: #{tpu_custom_call.1}
  #allocation0 [shape = 'u32[]', space=smem, size = 0x4, offset = 0x4, fixed_abs, tag = 'smem constant byte address 0x4 - core index']
  #allocation1 [shape = 'u32[144,128]{1,0:T(1,128)}', space=vmem, size = 0x12000, scoped, tag = 'internal scratch']
  %s0 = inlined_call_operand.hbm [shape: f32[8,1024], index: 0, kind: input, shape index: {}]
  %s1 = inlined_call_operand.vmem [shape: f32[8,1], index: 1, kind: input, shape index: {}]
  %s2 = inlined_call_operand.hbm [shape: f32[1,1,1], index: 2, kind: output, shape index: {}]
  %s3 = sld [smem:[#allocation0]]
  $region22: #{tpu_custom_call.1} parent=0
    _
  %s5 = ssub.s32 1, %s3
  %s6 = scalar_select 0, %s5, %s3
  $region1: #{tpu_custom_call.1} parent=0
    #allocation2 [shape = 'u8[32768]{0}', space=vmem, size = 0x8000, scoped, tag = 'input window, operand 0, single buffered']
    #allocation3 [shape = 's32[1]{0}', space=sflag, size = 0x4, scoped, tag = 'scoped memory for tpu_custom_call.1']
    #allocation4 [shape = 's32[1]{0}', space=sflag, size = 0x4, scoped, tag = 'scoped memory for tpu_custom_call.1']
    #allocation5 [shape = 'u8[512]{0}', space=vmem, size = 0x400, scoped, tag = 'output window, operand 0, single buffered']
    %7 = vsyncpa [#allocation3], 0
    %8 = vsyncpa [#allocation4], 0
    // Predicated region
    $region2: #{tpu_custom_call.1} parent=1 // pred_check
      _
    $region3: #{tpu_custom_call.1} parent=1 // pred_check_branch
      %10 = sbr.rel (0) target = $region5
    $region4: #{tpu_custom_call.1} parent=1 // pred_region
      %s12 = ssub.s32 1024, 1024
      %13 = vsyncadd [#allocation3], %s12
      %s15 = sshll.u32 [#allocation2], 4
      %s16 = int_to_ptr.vmem [resolvable:$true] %s15
      %18 = dma.hbm_to_vmem [thread:$0]  %s0, 1024, %s16, [#allocation3]
    $region5: #{tpu_custom_call.1} parent=1 // pred_fallthru
      _
    // Predicated region
    $region6: #{tpu_custom_call.1} parent=1 // pred_check
      _
    $region7: #{tpu_custom_call.1} parent=1 // pred_check_branch
      %20 = sbr.rel (0) target = $region9
    $region8: #{tpu_custom_call.1} parent=1 // pred_region
      _
    $region9: #{tpu_custom_call.1} parent=1 // pred_fallthru
      _
    // Predicated region
    $region10: #{tpu_custom_call.1} parent=1 // pred_check
      _
    $region11: #{tpu_custom_call.1} parent=1 // pred_check_branch
      %22 = sbr.rel (0) target = $region13
    $region12: #{tpu_custom_call.1} parent=1 // pred_region
      %23 = dma.done [#allocation3], 1024
    $region13: #{tpu_custom_call.1} parent=1 // pred_fallthru
      _
    %v24 = vld [vmem:[#allocation2] sm:$0xff]
    %v25 = vld [vmem:[#allocation2 + $0x8] sm:$0xff]
    %v26 = vld [vmem:[#allocation2 + $0x10] sm:$0xff]
    %v27 = vadd.f32 %v25, %v26
    %v28 = vld [vmem:[#allocation2 + $0x18] sm:$0xff]
    %v29 = vadd.f32 %v27, %v28
    %v30 = vld [vmem:[#allocation2 + $0x20] sm:$0xff]
    %v31 = vadd.f32 %v29, %v30
    %v32 = vld [vmem:[#allocation2 + $0x28] sm:$0xff]
    %v33 = vadd.f32 %v31, %v32
    %v34 = vld [vmem:[#allocation2 + $0x30] sm:$0xff]
    %v35 = vadd.f32 %v33, %v34
    %v36 = vld [vmem:[#allocation2 + $0x38] sm:$0xff]
    %v37 = vadd.f32 %v35, %v36
    %v38 = vmul.f32 %v37, 0.14285715
    %v39 = vmul.f32 %v38, %v24
    %40 = vadd.xlane.f32.xlu0 %v39
    %v41 = vpop.xlane.xlu0 %40
    %v42 = vadd.f32 %v41, 0.0
    %v43 = vmul.f32 %v38, %v38
    %44 = vadd.xlane.f32.xlu0 %v43
    %v45 = vpop.xlane.xlu0 %44
    %v46 = vadd.f32 %v45, 0.0
    %v47 = vmul.f32 %v24, %v24
    %48 = vadd.xlane.f32.xlu0 %v47
    %v49 = vpop.xlane.xlu0 %48
    %v50 = vadd.f32 %v49, 0.0
    %v51 = vmul.f32 %v46, %v50
    %v52 = vmax.f32 %v51, 1e-12
    %v53 = vrsqrt.pop %v52
    %v54 = vmul.f32 %v42, %v53
    %v55 = vsub.f32 0.0, %v54
    %v56 = vmul.f32 %v55, 1.442695
    %v57 = vpow.pop %v56
    %v58 = vadd.f32 %v57, 1.0
    %v59 = vrcp.pop %v58
    %v60 = vmul.f32 1.0, %v59
    %v61 = vld [vmem:[%s1] sm:$0xff]
    %v62 = vmul.f32 %v60, %v61
    %v63 = vsub.f32 1.0, %v61
    %v64 = vmul.f32 %v60, %v63
    %v65 = vsub.f32 1.0, %v64
    %v66 = vadd.f32 %v62, %v65
    %s67 = smul.u32 0, 8
    %v68 = vlaneseq
    %v69 = vshrl.u32 %v68, 7
    %v70 = vstv %s67
    %v71 = vadd.s32 %v70, %v69
    %vm72 = vcmp.lt.s32.totalorder %v71, 4
    %v73 = vsel %vm72, 1, 0
    %v74 = vcvt.s32.f32 %v73
    %v75 = vmul.f32 %v66, %v74
    %vm76 = vcmask 7168
    %v77 = vsel %vm76, %v75, 0.0
    %78 = vadd.xlane.f32.xlu0 %v77
    %v79 = vpop.xlane.xlu0 %78
    %v80 = vrot.slane %v79, 4
    %v81 = vadd.f32 %v79, %v80
    %v82 = vrot.slane %v81, 2
    %v83 = vadd.f32 %v81, %v82
    %v84 = vrot.slane %v83, 1
    %v85 = vadd.f32 %v83, %v84
    %s86 = vtos %v85
    %v87 = vstv %s86
    %vm88 = vcmask 0
    %89 = vst.msk [vmem:[#allocation5] sm:$0x1] %vm88, %v87
    // Predicated region
    $region14: #{tpu_custom_call.1} parent=1 // pred_check
      _
    $region15: #{tpu_custom_call.1} parent=1 // pred_check_branch
      %91 = sbr.rel (0) target = $region17
    $region16: #{tpu_custom_call.1} parent=1 // pred_region
      %s93 = ssub.s32 16, 16
      %94 = vsyncadd [#allocation4], %s93
      %s96 = sshll.u32 [#allocation5], 4
      %s97 = int_to_ptr.vmem [resolvable:$true] %s96
      %99 = dma.vmem_to_hbm [thread:$0]  %s97, 16, %s2, [#allocation4]
    $region17: #{tpu_custom_call.1} parent=1 // pred_fallthru
      _
    // Predicated region
    $region18: #{tpu_custom_call.1} parent=1 // pred_check
      _
    $region19: #{tpu_custom_call.1} parent=1 // pred_check_branch
      %101 = sbr.rel (0) target = $region21
    $region20: #{tpu_custom_call.1} parent=1 // pred_region
      %102 = dma.done [#allocation4], 16
    $region21: #{tpu_custom_call.1} parent=1 // pred_fallthru
      _
    %103 = vsyncpa [#allocation3], 1
    %104 = vsyncpa [#allocation4], 1

</llo_original>
